<compile_context>
chip_gen: v5e
topology: v5e:2x2
jax: 0.10.0
libtpu: 0.0.40
codegen_flags: <defaults>
</compile_context>

<pallas_src>
import jax
import jax.numpy as jnp
from jax import lax
from jax.experimental import pallas as pl
from jax.experimental.pallas import tpu as pltpu

# Packed-slab row offsets (every segment starts on an 8-sublane boundary).
W1_OFF = 0       # rows 0..7    : w1 (7,128), K padded 7 -> 8 (row 7 stays zero)
B1_OFF = 8       # row  8       : b1 (1,128)
W2_OFF = 16      # rows 16..143 : w2 (128,128)
B2_OFF = 144     # row  144     : b2 (1,128)
W3T_OFF = 152    # rows 152..153: w3^T (2,128)   -- transposed, no lane padding
B3_OFF = 154     # row  154     : b3 (lanes 0..1 live); rows 155..159 zero pad
SLAB_ROWS = 160  # multiple of 8; 160*128*4 B = 80 KB (was 288 rows / 144 KB)


def mlp_kernel(x_ref, p_ref, o_ref):
    """x_ref: (8, 8) padded input (row 0 live); p_ref: (160, 128) packed params;
    o_ref: (8, 128) lane-dense logits slab (cols 0..1 of every row = logits)."""
    x = x_ref[...]                                      # (8, 8)

    w1 = p_ref[W1_OFF:W1_OFF + 8, :]                    # (8, 128)
    b1 = p_ref[B1_OFF:B1_OFF + 1, :]                    # (1, 128)
    w2 = p_ref[W2_OFF:W2_OFF + 128, :]                  # (128, 128)
    b2 = p_ref[B2_OFF:B2_OFF + 1, :]                    # (1, 128)
    w3t = p_ref[W3T_OFF:W3T_OFF + 8, :]                 # (8, 128): rows 0..1 = w3^T
    b3 = p_ref[B3_OFF:B3_OFF + 1, :]                    # (1, 128): lanes 0..1 = b3

    h1 = jnp.maximum(jnp.dot(x, w1, preferred_element_type=jnp.float32) + b1, 0.0)
    h2 = jnp.maximum(jnp.dot(h1, w2, preferred_element_type=jnp.float32) + b2, 0.0)

    # Final 128 -> 2 layer: VPU broadcast-multiply + XLU lane reduction on the
    # live row of h2 (no zero-padded 128x128 w3, no narrow MXU matmul).
    sums = jnp.sum(h2[0:1, :] * w3t, axis=1, keepdims=True)       # (8, 1)
    lane = lax.broadcasted_iota(jnp.int32, (1, 128), 1)
    row = jnp.where(lane == 0, sums[0:1, :],
                    jnp.where(lane == 1, sums[1:2, :], 0.0)) + b3  # (1, 128)
    # Lane-dense, unmasked (8, 128) store; wrapper reads [0, :2].
    o_ref[...] = jnp.broadcast_to(row, (8, 128)).astype(o_ref.dtype)


def pack_params(params):
    """Pack (w1, b1, w2, b2, w3, b3) into one aligned (160, 128) f32 slab.
    Weights are stored as (in_features, out_features); w3 is stored transposed."""
    w1, b1, w2, b2, w3, b3 = params
    slab = jnp.zeros((SLAB_ROWS, 128), jnp.float32)
    slab = slab.at[W1_OFF:W1_OFF + 7, :].set(w1)          # K = 7 -> 8 zero pad
    slab = slab.at[B1_OFF, :].set(b1.reshape(128))
    slab = slab.at[W2_OFF:W2_OFF + 128, :].set(w2)
    slab = slab.at[B2_OFF, :].set(b2.reshape(128))
    slab = slab.at[W3T_OFF:W3T_OFF + 2, :].set(w3.T)      # (2, 128), no dead rows
    slab = slab.at[B3_OFF, :2].set(b3.reshape(2))
    return slab


def _make_forward(constrain_vmem):
    def fwd(x, packed_params):
        # unsqueeze(0) + Flatten == reshape to (1, 7); pad to an (8, 8) tile.
        x_pad = jnp.zeros((8, 8), jnp.float32).at[0, :7].set(x)
        p = packed_params
        if constrain_vmem:
            # Keep the 80 KB slab resident in VMEM at the kernel boundary
            # instead of re-staging it through a Pallas HBM->VMEM DMA per call.
            p = pltpu.with_memory_space_constraint(p, pltpu.MemorySpace.VMEM)
        vmem = pl.BlockSpec(memory_space=pltpu.MemorySpace.VMEM)
        out = pl.pallas_call(
            mlp_kernel,
            out_shape=jax.ShapeDtypeStruct((8, 128), jnp.float32),
            in_specs=[vmem, vmem],
            out_specs=vmem,
        )(x_pad, p)
        return out[:1, :2]                                # (1, 2) like torch
    return jax.jit(fwd)


_FORWARD_VMEM_RESIDENT = _make_forward(True)
_FORWARD_HBM_STAGED = _make_forward(False)
_FORWARD = None


def neural_network_forward(x, packed_params):
    """x: (7,) float32, packed_params: (160, 128) float32 -> logits (1, 2)."""
    global _FORWARD
    if _FORWARD is None:
        try:
            jax.block_until_ready(_FORWARD_VMEM_RESIDENT(x, packed_params))
            _FORWARD = _FORWARD_VMEM_RESIDENT
        except Exception:
            # VMEM placement constraint not supported by this JAX/XLA build;
            # fall back to the HBM-staged slab (Pallas DMAs 80 KB per call).
            _FORWARD = _FORWARD_HBM_STAGED
    return _FORWARD(x, packed_params)


def init_params(key):
    """Deterministic synthetic init with PyTorch Linear fan-in scaling.
    Weights stored transposed: (in_features, out_features)."""
    k1, k2, k3, k4, k5, k6 = jax.random.split(key, 6)

    def uinit(k, shape, fan_in):
        bound = 1.0 / jnp.sqrt(float(fan_in))
        return jax.random.uniform(k, shape, jnp.float32, -bound, bound)

    w1 = uinit(k1, (7, 128), 7)
    b1 = uinit(k2, (128,), 7)
    w2 = uinit(k3, (128, 128), 128)
    b2 = uinit(k4, (128,), 128)
    w3 = uinit(k5, (128, 2), 128)
    b3 = uinit(k6, (2,), 128)
    return (w1, b1, w2, b2, w3, b3)


if __name__ == "__main__":
    key = jax.random.PRNGKey(0)
    pkey, xkey = jax.random.split(key)

    params = init_params(pkey)
    packed = jax.block_until_ready(pack_params(params))  # pack once, keep resident
    x = jax.random.normal(xkey, (7,), jnp.float32)        # module expects (7,)

    logits = neural_network_forward(x, packed)
    jax.block_until_ready(logits)

    # Pure-JAX reference of the same math (unpadded, untransposed params).
    w1, b1, w2, b2, w3, b3 = params
    h = jnp.maximum(x.reshape(1, -1) @ w1 + b1[None, :], 0.0)
    h = jnp.maximum(h @ w2 + b2[None, :], 0.0)
    ref = h @ w3 + b3[None, :]

    assert logits.shape == (1, 2)
    assert jnp.allclose(logits, ref, atol=1e-5, rtol=1e-5)

    print("KERNEL_OK")
</pallas_src>

<mosaic_0001>
module attributes {stable_mosaic.version = 11 : i64} {
  func.func @mlp_kernel(%arg0: memref<8x8xf32, #tpu.memory_space<vmem>>, %arg1: memref<160x128xf32, #tpu.memory_space<vmem>>, %arg2: memref<8x128xf32, #tpu.memory_space<vmem>>) attributes {dimension_semantics = [], scalar_prefetch = 0 : i64, scratch_operands = 0 : i64, tpu.core_type = #tpu.core_type<tc>} {
    %c0 = arith.constant 0 : index
    %c0_0 = arith.constant 0 : index
    %0 = vector.load %arg0[%c0, %c0_0] : memref<8x8xf32, #tpu.memory_space<vmem>>, vector<8x8xf32>
    %c0_1 = arith.constant 0 : index
    %c0_2 = arith.constant 0 : index
    %1 = vector.load %arg1[%c0_1, %c0_2] : memref<160x128xf32, #tpu.memory_space<vmem>>, vector<8x128xf32>
    %c8 = arith.constant 8 : index
    %c0_3 = arith.constant 0 : index
    %2 = vector.load %arg1[%c8, %c0_3] : memref<160x128xf32, #tpu.memory_space<vmem>>, vector<1x128xf32>
    %c16 = arith.constant 16 : index
    %c0_4 = arith.constant 0 : index
    %3 = vector.load %arg1[%c16, %c0_4] : memref<160x128xf32, #tpu.memory_space<vmem>>, vector<128x128xf32>
    %c144 = arith.constant 144 : index
    %c0_5 = arith.constant 0 : index
    %4 = vector.load %arg1[%c144, %c0_5] : memref<160x128xf32, #tpu.memory_space<vmem>>, vector<1x128xf32>
    %c152 = arith.constant 152 : index
    %c0_6 = arith.constant 0 : index
    %5 = vector.load %arg1[%c152, %c0_6] : memref<160x128xf32, #tpu.memory_space<vmem>>, vector<8x128xf32>
    %c154 = arith.constant 154 : index
    %c0_7 = arith.constant 0 : index
    %6 = vector.load %arg1[%c154, %c0_7] : memref<160x128xf32, #tpu.memory_space<vmem>>, vector<1x128xf32>
    %cst = arith.constant dense<0.000000e+00> : vector<8x128xf32>
    %7 = tpu.matmul %0, %1, %cst {dimension_numbers = #tpu.dot_dimension_numbers<[1], [0], [0], [1], [0, 0, 1, 1], [], []>} : vector<8x8xf32>, vector<8x128xf32>, vector<8x128xf32> -> vector<8x128xf32>
    %8 = vector.broadcast %2 : vector<1x128xf32> to vector<8x128xf32>
    %9 = arith.addf %7, %8 : vector<8x128xf32>
    %cst_8 = arith.constant 0.000000e+00 : f32
    %10 = vector.broadcast %cst_8 : f32 to vector<8x128xf32>
    %11 = arith.maximumf %9, %10 : vector<8x128xf32>
    %cst_9 = arith.constant dense<0.000000e+00> : vector<8x128xf32>
    %12 = tpu.matmul %11, %3, %cst_9 {dimension_numbers = #tpu.dot_dimension_numbers<[1], [0], [0], [1], [0, 0, 1, 1], [], []>} : vector<8x128xf32>, vector<128x128xf32>, vector<8x128xf32> -> vector<8x128xf32>
    %13 = vector.broadcast %4 : vector<1x128xf32> to vector<8x128xf32>
    %14 = arith.addf %12, %13 : vector<8x128xf32>
    %cst_10 = arith.constant 0.000000e+00 : f32
    %15 = vector.broadcast %cst_10 : f32 to vector<8x128xf32>
    %16 = arith.maximumf %14, %15 : vector<8x128xf32>
    %17 = vector.extract_strided_slice %16 {offsets = [0, 0], sizes = [1, 128], strides = [1, 1]} : vector<8x128xf32> to vector<1x128xf32>
    %18 = vector.broadcast %17 : vector<1x128xf32> to vector<8x128xf32>
    %19 = arith.mulf %18, %5 : vector<8x128xf32>
    %cst_11 = arith.constant dense<0.000000e+00> : vector<8xf32>
    %20 = vector.multi_reduction <add>, %19, %cst_11 [1] : vector<8x128xf32> to vector<8xf32>
    %21 = vector.shape_cast %20 : vector<8xf32> to vector<8x1xf32>
    %22 = tpu.iota {dimensions = array<i32: 1>} : vector<1x128xi32>
    %c0_i32 = arith.constant 0 : i32
    %23 = vector.broadcast %c0_i32 : i32 to vector<1x128xi32>
    %24 = arith.cmpi eq, %22, %23 : vector<1x128xi32>
    %25 = vector.extract_strided_slice %21 {offsets = [0, 0], sizes = [1, 1], strides = [1, 1]} : vector<8x1xf32> to vector<1x1xf32>
    %c1_i32 = arith.constant 1 : i32
    %26 = vector.broadcast %c1_i32 : i32 to vector<1x128xi32>
    %27 = arith.cmpi eq, %22, %26 : vector<1x128xi32>
    %28 = vector.extract_strided_slice %21 {offsets = [1, 0], sizes = [1, 1], strides = [1, 1]} : vector<8x1xf32> to vector<1x1xf32>
    %cst_12 = arith.constant 0.000000e+00 : f32
    %29 = vector.shape_cast %28 : vector<1x1xf32> to vector<1x1xf32>
    %30 = vector.broadcast %29 : vector<1x1xf32> to vector<1x128xf32>
    %31 = vector.broadcast %cst_12 : f32 to vector<1x128xf32>
    %32 = arith.select %27, %30, %31 : vector<1x128xi1>, vector<1x128xf32>
    %33 = vector.shape_cast %25 : vector<1x1xf32> to vector<1x1xf32>
    %34 = vector.broadcast %33 : vector<1x1xf32> to vector<1x128xf32>
    %35 = arith.select %24, %34, %32 : vector<1x128xi1>, vector<1x128xf32>
    %36 = arith.addf %35, %6 : vector<1x128xf32>
    %37 = vector.shape_cast %36 : vector<1x128xf32> to vector<1x128xf32>
    %38 = vector.broadcast %37 : vector<1x128xf32> to vector<8x128xf32>
    %c0_13 = arith.constant 0 : index
    %c0_14 = arith.constant 0 : index
    %39 = vector.load %arg2[%c0_13, %c0_14] : memref<8x128xf32, #tpu.memory_space<vmem>>, vector<8x128xf32>
    tpu.vector_store %arg2[%c0_13, %c0_14], %38 {strides = array<i32>} : memref<8x128xf32, #tpu.memory_space<vmem>>, vector<8x128xf32>,
    return
  }
}

module attributes {stable_mosaic.version = 11 : i64} {
  func.func @mlp_kernel(%arg0: memref<8x8xf32, #tpu.memory_space<vmem>>, %arg1: memref<160x128xf32, #tpu.memory_space<vmem>>, %arg2: memref<8x128xf32, #tpu.memory_space<vmem>>) attributes {dimension_semantics = [], scalar_prefetch = 0 : i64, scratch_operands = 0 : i64, tpu.core_type = #tpu.core_type<tc>} {
    %c0 = arith.constant 0 : index
    %c0_0 = arith.constant 0 : index
    %0 = vector.load %arg0[%c0, %c0_0] : memref<8x8xf32, #tpu.memory_space<vmem>>, vector<8x8xf32>
    %c0_1 = arith.constant 0 : index
    %c0_2 = arith.constant 0 : index
    %1 = vector.load %arg1[%c0_1, %c0_2] : memref<160x128xf32, #tpu.memory_space<vmem>>, vector<8x128xf32>
    %c8 = arith.constant 8 : index
    %c0_3 = arith.constant 0 : index
    %2 = vector.load %arg1[%c8, %c0_3] : memref<160x128xf32, #tpu.memory_space<vmem>>, vector<1x128xf32>
    %c16 = arith.constant 16 : index
    %c0_4 = arith.constant 0 : index
    %3 = vector.load %arg1[%c16, %c0_4] : memref<160x128xf32, #tpu.memory_space<vmem>>, vector<128x128xf32>
    %c144 = arith.constant 144 : index
    %c0_5 = arith.constant 0 : index
    %4 = vector.load %arg1[%c144, %c0_5] : memref<160x128xf32, #tpu.memory_space<vmem>>, vector<1x128xf32>
    %c152 = arith.constant 152 : index
    %c0_6 = arith.constant 0 : index
    %5 = vector.load %arg1[%c152, %c0_6] : memref<160x128xf32, #tpu.memory_space<vmem>>, vector<8x128xf32>
    %c154 = arith.constant 154 : index
    %c0_7 = arith.constant 0 : index
    %6 = vector.load %arg1[%c154, %c0_7] : memref<160x128xf32, #tpu.memory_space<vmem>>, vector<1x128xf32>
    %cst = arith.constant dense<0.000000e+00> : vector<8x128xf32>
    %7 = tpu.matmul %0, %1, %cst {dimension_numbers = #tpu.dot_dimension_numbers<[1], [0], [0], [1], [0, 0, 1, 1], [], []>} : vector<8x8xf32>, vector<8x128xf32>, vector<8x128xf32> -> vector<8x128xf32>
    %8 = vector.broadcast %2 : vector<1x128xf32> to vector<8x128xf32>
    %9 = arith.addf %7, %8 : vector<8x128xf32>
    %cst_8 = arith.constant 0.000000e+00 : f32
    %10 = vector.broadcast %cst_8 : f32 to vector<8x128xf32>
    %11 = arith.maximumf %9, %10 : vector<8x128xf32>
    %cst_9 = arith.constant dense<0.000000e+00> : vector<8x128xf32>
    %12 = tpu.matmul %11, %3, %cst_9 {dimension_numbers = #tpu.dot_dimension_numbers<[1], [0], [0], [1], [0, 0, 1, 1], [], []>} : vector<8x128xf32>, vector<128x128xf32>, vector<8x128xf32> -> vector<8x128xf32>
    %13 = vector.broadcast %4 : vector<1x128xf32> to vector<8x128xf32>
    %14 = arith.addf %12, %13 : vector<8x128xf32>
    %cst_10 = arith.constant 0.000000e+00 : f32
    %15 = vector.broadcast %cst_10 : f32 to vector<8x128xf32>
    %16 = arith.maximumf %14, %15 : vector<8x128xf32>
    %17 = vector.extract_strided_slice %16 {offsets = [0, 0], sizes = [1, 128], strides = [1, 1]} : vector<8x128xf32> to vector<1x128xf32>
    %18 = vector.broadcast %17 : vector<1x128xf32> to vector<8x128xf32>
    %19 = arith.mulf %18, %5 : vector<8x128xf32>
    %cst_11 = arith.constant dense<0.000000e+00> : vector<8xf32>
    %20 = vector.multi_reduction <add>, %19, %cst_11 [1] : vector<8x128xf32> to vector<8xf32>
    %21 = vector.shape_cast %20 : vector<8xf32> to vector<8x1xf32>
    %22 = tpu.iota {dimensions = array<i32: 1>} : vector<1x128xi32>
    %c0_i32 = arith.constant 0 : i32
    %23 = vector.broadcast %c0_i32 : i32 to vector<1x128xi32>
    %24 = arith.cmpi eq, %22, %23 : vector<1x128xi32>
    %25 = vector.extract_strided_slice %21 {offsets = [0, 0], sizes = [1, 1], strides = [1, 1]} : vector<8x1xf32> to vector<1x1xf32>
    %c1_i32 = arith.constant 1 : i32
    %26 = vector.broadcast %c1_i32 : i32 to vector<1x128xi32>
    %27 = arith.cmpi eq, %22, %26 : vector<1x128xi32>
    %28 = vector.extract_strided_slice %21 {offsets = [1, 0], sizes = [1, 1], strides = [1, 1]} : vector<8x1xf32> to vector<1x1xf32>
    %cst_12 = arith.constant 0.000000e+00 : f32
    %29 = vector.shape_cast %28 : vector<1x1xf32> to vector<1x1xf32>
    %30 = vector.broadcast %29 : vector<1x1xf32> to vector<1x128xf32>
    %31 = vector.broadcast %cst_12 : f32 to vector<1x128xf32>
    %32 = arith.select %27, %30, %31 : vector<1x128xi1>, vector<1x128xf32>
    %33 = vector.shape_cast %25 : vector<1x1xf32> to vector<1x1xf32>
    %34 = vector.broadcast %33 : vector<1x1xf32> to vector<1x128xf32>
    %35 = arith.select %24, %34, %32 : vector<1x128xi1>, vector<1x128xf32>
    %36 = arith.addf %35, %6 : vector<1x128xf32>
    %37 = vector.shape_cast %36 : vector<1x128xf32> to vector<1x128xf32>
    %38 = vector.broadcast %37 : vector<1x128xf32> to vector<8x128xf32>
    %c0_13 = arith.constant 0 : index
    %c0_14 = arith.constant 0 : index
    %39 = vector.load %arg2[%c0_13, %c0_14] : memref<8x128xf32, #tpu.memory_space<vmem>>, vector<8x128xf32>
    tpu.vector_store %arg2[%c0_13, %c0_14], %38 {strides = array<i32>} : memref<8x128xf32, #tpu.memory_space<vmem>>, vector<8x128xf32>,
    return
  }
}

</mosaic_0001>

<llo_original>
// kernel: fwd.1
$region0: #{fwd.1}
  #allocation0 [shape = 'u32[]', space=smem, size = 0x4, offset = 0x4, fixed_abs, tag = 'smem constant byte address 0x4 - core index']
  #allocation1 [shape = 'u32[72,128]{1,0:T(1,128)}', space=vmem, size = 0x9000, scoped, tag = 'internal scratch']
  %s0 = inlined_call_operand.vmem [shape: f32[8,8], index: 0, kind: input, shape index: {}]
  %s1 = inlined_call_operand.vmem [shape: f32[160,128], index: 1, kind: input, shape index: {}]
  %s2 = inlined_call_operand.vmem [shape: f32[8,128], index: 2, kind: output, shape index: {}]
  %s3 = sld [smem:[#allocation0]]
  $region18: #{fwd.1} parent=0
    _
  %s5 = ssub.s32 1, %s3
  %s6 = scalar_select 0, %s5, %s3
  // Predicated region
  $region2: #{fwd.1} parent=0 // pred_check
    _
  $region3: #{fwd.1} parent=0 // pred_check_branch
    %8 = sbr.rel (0) target = $region5
  $region4: #{fwd.1} parent=0 // pred_region
    _
  $region5: #{fwd.1} parent=0 // pred_fallthru
    _
  // Predicated region
  $region6: #{fwd.1} parent=0 // pred_check
    _
  $region7: #{fwd.1} parent=0 // pred_check_branch
    %10 = sbr.rel (0) target = $region9
  $region8: #{fwd.1} parent=0 // pred_region
    _
  $region9: #{fwd.1} parent=0 // pred_fallthru
    _
  %v11 = vld [vmem:[%s0] sm:$0xff]
  %v12 = vld [vmem:[%s1] sm:$0xff]
  %v13 = vld [vmem:[%s1 + $0x8] sm:$0x1]
  %v14 = vld [vmem:[%s1 + $0x10] sm:$0xff]
  %v15 = vld [vmem:[%s1 + $0x18] sm:$0xff]
  %v16 = vld [vmem:[%s1 + $0x20] sm:$0xff]
  %v17 = vld [vmem:[%s1 + $0x28] sm:$0xff]
  %v18 = vld [vmem:[%s1 + $0x30] sm:$0xff]
  %v19 = vld [vmem:[%s1 + $0x38] sm:$0xff]
  %v20 = vld [vmem:[%s1 + $0x40] sm:$0xff]
  %v21 = vld [vmem:[%s1 + $0x48] sm:$0xff]
  %v22 = vld [vmem:[%s1 + $0x50] sm:$0xff]
  %v23 = vld [vmem:[%s1 + $0x58] sm:$0xff]
  %v24 = vld [vmem:[%s1 + $0x60] sm:$0xff]
  %v25 = vld [vmem:[%s1 + $0x68] sm:$0xff]
  %v26 = vld [vmem:[%s1 + $0x70] sm:$0xff]
  %v27 = vld [vmem:[%s1 + $0x78] sm:$0xff]
  %v28 = vld [vmem:[%s1 + $0x80] sm:$0xff]
  %v29 = vld [vmem:[%s1 + $0x88] sm:$0xff]
  %v30 = vld [vmem:[%s1 + $0x90] sm:$0x1]
  %v31 = vld [vmem:[%s1 + $0x98] sm:$0xff]
  %v32 = vld [vmem:[%s1 + $0x9a] sm:$0x1]
  %v33 = vperm.slane %v13, 0
  %vm34 = vcmask 64512
  %v36 = vsel %vm34, %v11, 0
  %38 = vmatpush.msra.mxu0 0.0
  %39 = vmatpush.msra.mxu0 0.0
  %40 = vmatpush.msra.mxu0 0.0
  %41 = vmatpush.msra.mxu0 0.0
  %42 = vmatpush.msra.mxu0 0.0
  %43 = vmatpush.msra.mxu0 0.0
  %44 = vmatpush.msra.mxu0 0.0
  %45 = vmatpush.msra.mxu0 0.0
  %46 = vmatpush.msra.mxu0 0.0
  %47 = vmatpush.msra.mxu0 0.0
  %48 = vmatpush.msra.mxu0 0.0
  %49 = vmatpush.msra.mxu0 0.0
  %50 = vmatpush.msra.mxu0 0.0
  %51 = vmatpush.msra.mxu0 0.0
  %52 = vmatpush.msra.mxu0 0.0
  %53 = vmatpush.msra.mxu0 %v12
  %54 = vmatmul.f32.gmra.mxu0 %v36
  %v55 = vpop.f32.mrf.mxu0
  %v56 = vadd.f32 %v33, %v55
  %57 = vdwg.mxu0
  %v58 = vmax.f32 %v56, 0.0
  %v59 = vperm.slane %v30, 0
  %60 = vmatpush.msra.mxu0 %v29
  %61 = vmatpush.msra.mxu0 %v28
  %62 = vmatpush.msra.mxu0 %v27
  %63 = vmatpush.msra.mxu0 %v26
  %64 = vmatpush.msra.mxu0 %v25
  %65 = vmatpush.msra.mxu0 %v24
  %66 = vmatpush.msra.mxu0 %v23
  %67 = vmatpush.msra.mxu0 %v22
  %68 = vmatpush.msra.mxu0 %v21
  %69 = vmatpush.msra.mxu0 %v20
  %70 = vmatpush.msra.mxu0 %v19
  %71 = vmatpush.msra.mxu0 %v18
  %72 = vmatpush.msra.mxu0 %v17
  %73 = vmatpush.msra.mxu0 %v16
  %74 = vmatpush.msra.mxu0 %v15
  %75 = vmatpush.msra.mxu0 %v14
  %76 = vmatmul.f32.gmra.mxu0 %v58
  %v77 = vpop.f32.mrf.mxu0
  %v78 = vadd.f32 %v59, %v77
  %79 = vdwg.mxu0
  %v80 = vmax.f32 %v78, 0.0
  %v81 = vperm.slane %v80, 0
  %v82 = vmul.f32 %v81, %v31
  %83 = vadd.xlane.f32.xlu0 %v82
  %v84 = vpop.xlane.xlu0 %83
  %v85 = vlaneseq
  %v86 = vand.u32 %v85, 127
  %vm87 = vcmp.eq.s32.totalorder %v86, 0
  %vm88 = vcmp.eq.s32.totalorder %v86, 1
  %v89 = vsel %vm88, %v84, 0.0
  %v91 = vrot.slane %v89, 1
  %v93 = vsel %vm87, %v84, %v91
  %v94 = vadd.f32 %v93, %v32
  %v95 = vperm.slane %v94, 0
  %96 = vst [vmem:[%s2] sm:$0xff] %v95
  // Predicated region
  $region10: #{fwd.1} parent=0 // pred_check
    _
  $region11: #{fwd.1} parent=0 // pred_check_branch
    %98 = sbr.rel (0) target = $region13
  $region12: #{fwd.1} parent=0 // pred_region
    _
  $region13: #{fwd.1} parent=0 // pred_fallthru
    _
  // Predicated region
  $region14: #{fwd.1} parent=0 // pred_check
    _
  $region15: #{fwd.1} parent=0 // pred_check_branch
    %100 = sbr.rel (0) target = $region17
  $region16: #{fwd.1} parent=0 // pred_region
    _
  $region17: #{fwd.1} parent=0 // pred_fallthru
    _

// kernel: fwd.1
$region0: #{fwd.1}
  #allocation0 [shape = 'u32[]', space=smem, size = 0x4, offset = 0x4, fixed_abs, tag = 'smem constant byte address 0x4 - core index']
  #allocation1 [shape = 'u32[72,128]{1,0:T(1,128)}', space=vmem, size = 0x9000, scoped, tag = 'internal scratch']
  %s0 = inlined_call_operand.vmem [shape: f32[8,8], index: 0, kind: input, shape index: {}]
  %s1 = inlined_call_operand.hbm [shape: f32[160,128], index: 1, kind: input, shape index: {}]
  %s2 = inlined_call_operand.vmem [shape: f32[8,128], index: 2, kind: output, shape index: {}]
  %s3 = sld [smem:[#allocation0]]
  $region22: #{fwd.1} parent=0
    _
  %s5 = ssub.s32 1, %s3
  %s6 = scalar_select 0, %s5, %s3
  $region1: #{fwd.1} parent=0
    #allocation2 [shape = 'u8[81920]{0}', space=vmem, size = 0x14000, scoped, tag = 'input window, operand 1, single buffered']
    #allocation3 [shape = 's32[1]{0}', space=sflag, size = 0x4, scoped, tag = 'scoped memory for fwd.1']
    %7 = vsyncpa [#allocation3], 0
    // Predicated region
    $region2: #{fwd.1} parent=1 // pred_check
      _
    $region3: #{fwd.1} parent=1 // pred_check_branch
      %9 = sbr.rel (0) target = $region5
    $region4: #{fwd.1} parent=1 // pred_region
      _
    $region5: #{fwd.1} parent=1 // pred_fallthru
      _
    // Predicated region
    $region6: #{fwd.1} parent=1 // pred_check
      _
    $region7: #{fwd.1} parent=1 // pred_check_branch
      %11 = sbr.rel (0) target = $region9
    $region8: #{fwd.1} parent=1 // pred_region
      %13 = vsyncadd [#allocation3], 0
      %s14 = sshll.u32 %s1, 4
      %s15 = int_to_ptr.hbm [resolvable:$true] %s14
      %s16 = sshll.u32 [#allocation2], 4
      %s17 = int_to_ptr.vmem [resolvable:$true] %s16
      %22 = dma.hbm_to_vmem [thread:$0]  %s15, 2560, %s17, [#allocation3], 128, 128, 8
    $region9: #{fwd.1} parent=1 // pred_fallthru
      _
    // Predicated region
    $region10: #{fwd.1} parent=1 // pred_check
      _
    $region11: #{fwd.1} parent=1 // pred_check_branch
      %24 = sbr.rel (0) target = $region13
    $region12: #{fwd.1} parent=1 // pred_region
      %26 = dma.done [#allocation3], 2560
    $region13: #{fwd.1} parent=1 // pred_fallthru
      _
    %v27 = vld [vmem:[%s0] sm:$0xff]
    %v28 = vld [vmem:[#allocation2] sm:$0xff]
    %v29 = vld [vmem:[#allocation2 + $0x8] sm:$0x1]
    %v30 = vld [vmem:[#allocation2 + $0x10] sm:$0xff]
    %v31 = vld [vmem:[#allocation2 + $0x18] sm:$0xff]
    %v32 = vld [vmem:[#allocation2 + $0x20] sm:$0xff]
    %v33 = vld [vmem:[#allocation2 + $0x28] sm:$0xff]
    %v34 = vld [vmem:[#allocation2 + $0x30] sm:$0xff]
    %v35 = vld [vmem:[#allocation2 + $0x38] sm:$0xff]
    %v36 = vld [vmem:[#allocation2 + $0x40] sm:$0xff]
    %v37 = vld [vmem:[#allocation2 + $0x48] sm:$0xff]
    %v38 = vld [vmem:[#allocation2 + $0x50] sm:$0xff]
    %v39 = vld [vmem:[#allocation2 + $0x58] sm:$0xff]
    %v40 = vld [vmem:[#allocation2 + $0x60] sm:$0xff]
    %v41 = vld [vmem:[#allocation2 + $0x68] sm:$0xff]
    %v42 = vld [vmem:[#allocation2 + $0x70] sm:$0xff]
    %v43 = vld [vmem:[#allocation2 + $0x78] sm:$0xff]
    %v44 = vld [vmem:[#allocation2 + $0x80] sm:$0xff]
    %v45 = vld [vmem:[#allocation2 + $0x88] sm:$0xff]
    %v46 = vld [vmem:[#allocation2 + $0x90] sm:$0x1]
    %v47 = vld [vmem:[#allocation2 + $0x98] sm:$0xff]
    %v48 = vld [vmem:[#allocation2 + $0x9a] sm:$0x1]
    %v49 = vperm.slane %v29, 0
    %vm50 = vcmask 64512
    %v52 = vsel %vm50, %v27, 0
    %54 = vmatpush.msra.mxu0 0.0
    %55 = vmatpush.msra.mxu0 0.0
    %56 = vmatpush.msra.mxu0 0.0
    %57 = vmatpush.msra.mxu0 0.0
    %58 = vmatpush.msra.mxu0 0.0
    %59 = vmatpush.msra.mxu0 0.0
    %60 = vmatpush.msra.mxu0 0.0
    %61 = vmatpush.msra.mxu0 0.0
    %62 = vmatpush.msra.mxu0 0.0
    %63 = vmatpush.msra.mxu0 0.0
    %64 = vmatpush.msra.mxu0 0.0
    %65 = vmatpush.msra.mxu0 0.0
    %66 = vmatpush.msra.mxu0 0.0
    %67 = vmatpush.msra.mxu0 0.0
    %68 = vmatpush.msra.mxu0 0.0
    %69 = vmatpush.msra.mxu0 %v28
    %70 = vmatmul.f32.gmra.mxu0 %v52
    %v71 = vpop.f32.mrf.mxu0
    %v72 = vadd.f32 %v49, %v71
    %73 = vdwg.mxu0
    %v74 = vmax.f32 %v72, 0.0
    %v75 = vperm.slane %v46, 0
    %76 = vmatpush.msra.mxu0 %v45
    %77 = vmatpush.msra.mxu0 %v44
    %78 = vmatpush.msra.mxu0 %v43
    %79 = vmatpush.msra.mxu0 %v42
    %80 = vmatpush.msra.mxu0 %v41
    %81 = vmatpush.msra.mxu0 %v40
    %82 = vmatpush.msra.mxu0 %v39
    %83 = vmatpush.msra.mxu0 %v38
    %84 = vmatpush.msra.mxu0 %v37
    %85 = vmatpush.msra.mxu0 %v36
    %86 = vmatpush.msra.mxu0 %v35
    %87 = vmatpush.msra.mxu0 %v34
    %88 = vmatpush.msra.mxu0 %v33
    %89 = vmatpush.msra.mxu0 %v32
    %90 = vmatpush.msra.mxu0 %v31
    %91 = vmatpush.msra.mxu0 %v30
    %92 = vmatmul.f32.gmra.mxu0 %v74
    %v93 = vpop.f32.mrf.mxu0
    %v94 = vadd.f32 %v75, %v93
    %95 = vdwg.mxu0
    %v96 = vmax.f32 %v94, 0.0
    %v97 = vperm.slane %v96, 0
    %v98 = vmul.f32 %v97, %v47
    %99 = vadd.xlane.f32.xlu0 %v98
    %v100 = vpop.xlane.xlu0 %99
    %v101 = vlaneseq
    %v102 = vand.u32 %v101, 127
    %vm103 = vcmp.eq.s32.totalorder %v102, 0
    %vm104 = vcmp.eq.s32.totalorder %v102, 1
    %v105 = vsel %vm104, %v100, 0.0
    %v107 = vrot.slane %v105, 1
    %v109 = vsel %vm103, %v100, %v107
    %v110 = vadd.f32 %v109, %v48
    %v111 = vperm.slane %v110, 0
    %112 = vst [vmem:[%s2] sm:$0xff] %v111
    // Predicated region
    $region14: #{fwd.1} parent=1 // pred_check
      _
    $region15: #{fwd.1} parent=1 // pred_check_branch
      %114 = sbr.rel (0) target = $region17
    $region16: #{fwd.1} parent=1 // pred_region
      _
    $region17: #{fwd.1} parent=1 // pred_fallthru
      _
    // Predicated region
    $region18: #{fwd.1} parent=1 // pred_check
      _
    $region19: #{fwd.1} parent=1 // pred_check_branch
      %116 = sbr.rel (0) target = $region21
    $region20: #{fwd.1} parent=1 // pred_region
      _
    $region21: #{fwd.1} parent=1 // pred_fallthru
      _
    %117 = vsyncpa [#allocation3], 1

</llo_original>
